<compile_context>
chip_gen: v5e
topology: v5e:2x2
jax: 0.10.0
libtpu: 0.0.40
codegen_flags: <defaults>
</compile_context>

<pallas_src>
import functools

import jax
import jax.numpy as jnp
from jax.experimental import pallas as pl
from jax.experimental.pallas import tpu as pltpu


_LANES = 128

# Packed scalar-parameter layout (f32, SMEM):
#   [0:2)   true_y0
#   [2:6)   A  (row-major: A00, A01, A10, A11)
#   [6:10)  B  (row-major)
_N_PARAMS = 10


def _lambda2_kernel(params_ref, y_ref, o_ref):
    # y_ref / o_ref: (ROWS, 128) f32 tiles of the flattened interleaved state
    # [x0_f0, x0_f1, x1_f0, x1_f1, ...]: even lanes hold feature 0, odd lanes
    # hold feature 1.  Each 128-lane row holds 64 whole states, so feature
    # pairs never straddle a row boundary.
    y = y_ref[...]
    lanes = y.shape[-1]

    lane = jax.lax.broadcasted_iota(jnp.int32, (1, lanes), 1)
    even = (lane & 1) == 0                       # (1, lanes) parity mask (broadcasts)

    y0_0, y0_1 = params_ref[0], params_ref[1]
    a00, a01, a10, a11 = params_ref[2], params_ref[3], params_ref[4], params_ref[5]
    b00, b01, b10, b11 = params_ref[6], params_ref[7], params_ref[8], params_ref[9]

    # Partner feature of every lane (feature 1 for even lanes, feature 0 for
    # odd).  roll(1): out[i] = y[i-1];  roll(lanes-1) == roll(-1): out[i] =
    # y[i+1].  Wrap-around lanes are discarded by the parity select.
    y_next = pltpu.roll(y, lanes - 1, 1)
    y_prev = pltpu.roll(y, 1, 1)
    y_other = jnp.where(even, y_next, y_prev)

    y0_self = jnp.where(even, y0_0, y0_1)        # (1, lanes), broadcast over rows
    y0_other = jnp.where(even, y0_1, y0_0)

    # xTx0 replicated onto both lanes of each state -- no cross-lane reduce.
    xtx0 = y * y0_self + y_other * y0_other
    s_pos = jax.nn.sigmoid(xtx0)                 # single EUP transcendental
    s_neg = 1.0 - s_pos                          # sigmoid(-x): VPU sub

    d_self, d_other = y - y0_self, y_other - y0_other      # y - y0 (interleaved)
    u_self, u_other = y + y0_self, y_other + y0_other      # y + y0 (interleaved)

    # nn.Linear(bias=False): out_i = W[i,0]*in_0 + W[i,1]*in_1.  The output
    # component i equals the lane parity, so select W's row by parity and use
    # VPU FMAs -- no MXU push/pop, no transpose of W, no cross-lane reduce.
    a_self = jnp.where(even, a00, a11)
    a_other = jnp.where(even, a01, a10)
    b_self = jnp.where(even, b00, b11)
    b_other = jnp.where(even, b01, b10)

    ay = a_self * d_self + a_other * d_other
    by = b_self * u_self + b_other * u_other

    o_ref[...] = s_pos * ay + s_neg * by         # one unmasked full-tile store


def _round_up(a, b):
    return pl.cdiv(a, b) * b


@functools.partial(jax.jit, static_argnames=("max_rows_per_tile",))
def lambda2_forward(t, y, true_y0, A, B, *, max_rows_per_tile=512):
    """Pallas forward pass of Lambda2.  `t` is unused (ODE-solver signature)."""
    del t
    N, D = y.shape
    assert D == 2 and A.shape == (2, 2) and B.shape == (2, 2)

    y0 = true_y0.reshape(-1)[:2].astype(jnp.float32)
    params = jnp.concatenate(
        [y0, A.reshape(-1).astype(jnp.float32), B.reshape(-1).astype(jnp.float32)])

    # Zero-copy flatten of the interleaved (N, 2) state (row-major reshape);
    # pad up to a whole number of lane-dense (rows_per_tile, 128) tiles.
    flat = y.astype(jnp.float32).reshape(-1)                 # (2N,)
    rows_needed = pl.cdiv(2 * N, _LANES)
    rows_per_tile = _round_up(
        min(max_rows_per_tile, _round_up(rows_needed, 8)), 8)
    n_rows = _round_up(rows_needed, rows_per_tile)
    total = n_rows * _LANES
    if total != flat.shape[0]:
        flat = jnp.pad(flat, (0, total - flat.shape[0]))
    y_mat = flat.reshape(n_rows, _LANES)

    out = pl.pallas_call(
        _lambda2_kernel,
        out_shape=jax.ShapeDtypeStruct((n_rows, _LANES), jnp.float32),
        grid=(n_rows // rows_per_tile,),
        in_specs=[
            pl.BlockSpec(memory_space=pltpu.MemorySpace.SMEM),       # packed scalars
            pl.BlockSpec((rows_per_tile, _LANES), lambda i: (i, 0)),  # state tiles
        ],
        out_specs=pl.BlockSpec((rows_per_tile, _LANES), lambda i: (i, 0)),
        compiler_params=pltpu.CompilerParams(
            dimension_semantics=("parallel",)),                      # v7x: 2 TCs
    )(params, y_mat)

    # Padded lanes compute garbage and are sliced off here (they never feed
    # back because this call is stateless).
    return out.reshape(-1)[: 2 * N].reshape(N, 2)


def lambda2_reference(y, true_y0, A, B):
    y0 = true_y0.reshape(1, -1)[:, :2]
    xtx0 = jnp.sum(y * y0, axis=1, keepdims=True)
    return (jax.nn.sigmoid(xtx0) * ((y - y0) @ A.T)
            + jax.nn.sigmoid(-xtx0) * ((y + y0) @ B.T))


if __name__ == "__main__":
    key = jax.random.PRNGKey(0)
    k_y1, k_y2, k_a, k_b = jax.random.split(key, 4)

    true_y0 = jnp.array([[1.0, 1.0]], dtype=jnp.float32)     # see NOTE above
    A = jax.random.normal(k_a, (2, 2), dtype=jnp.float32)    # nn.Linear(2,2).weight
    B = jax.random.normal(k_b, (2, 2), dtype=jnp.float32)    # nn.Linear(2,2).weight
    t = jnp.float32(0.0)

    # Case 1: small batch, single tile (exercises lane padding inside a tile).
    y1 = jax.random.normal(k_y1, (200, 2), dtype=jnp.float32)
    out1 = jax.block_until_ready(lambda2_forward(t, y1, true_y0, A, B))
    ref1 = lambda2_reference(y1, true_y0, A, B)
    assert out1.shape == y1.shape and out1.dtype == jnp.float32
    assert jnp.allclose(out1, ref1, atol=1e-5, rtol=1e-5), float(
        jnp.max(jnp.abs(out1 - ref1)))

    # Case 2: multi-tile grid (4 parallel grid steps) with a small tile cap.
    y2 = jax.random.normal(k_y2, (2000, 2), dtype=jnp.float32)
    out2 = jax.block_until_ready(
        lambda2_forward(t, y2, true_y0, A, B, max_rows_per_tile=8))
    ref2 = lambda2_reference(y2, true_y0, A, B)
    assert jnp.allclose(out2, ref2, atol=1e-5, rtol=1e-5), float(
        jnp.max(jnp.abs(out2 - ref2)))

    print("KERNEL_OK")
</pallas_src>

<mosaic_0001>
module attributes {stable_mosaic.version = 11 : i64} {
  func.func @_lambda2_kernel(%arg0: i32, %arg1: memref<10xf32, #tpu.memory_space<smem>>, %arg2: memref<8x128xf32, #tpu.memory_space<vmem>>, %arg3: memref<8x128xf32, #tpu.memory_space<vmem>>) attributes {dimension_semantics = [#tpu.dimension_semantics<parallel>], iteration_bounds = array<i64: 1>, scalar_prefetch = 0 : i64, scratch_operands = 0 : i64, tpu.core_type = #tpu.core_type<tc>, window_params = [{transform_indices = @transform_0, window_bounds = array<i64: 10>}, {transform_indices = @transform_1, window_bounds = array<i64: 8, 128>}, {transform_indices = @transform_2, window_bounds = array<i64: 8, 128>}]} {
    %c0 = arith.constant 0 : index
    %c0_0 = arith.constant 0 : index
    %0 = vector.load %arg2[%c0, %c0_0] : memref<8x128xf32, #tpu.memory_space<vmem>>, vector<8x128xf32>
    %1 = tpu.iota {dimensions = array<i32: 1>} : vector<1x128xi32>
    %c1_i32 = arith.constant 1 : i32
    %2 = vector.broadcast %c1_i32 : i32 to vector<1x128xi32>
    %3 = arith.andi %1, %2 : vector<1x128xi32>
    %c0_i32 = arith.constant 0 : i32
    %4 = vector.broadcast %c0_i32 : i32 to vector<1x128xi32>
    %5 = arith.cmpi eq, %3, %4 : vector<1x128xi32>
    %c0_1 = arith.constant 0 : index
    %6 = memref.load %arg1[%c0_1] : memref<10xf32, #tpu.memory_space<smem>>
    %c1 = arith.constant 1 : index
    %7 = memref.load %arg1[%c1] : memref<10xf32, #tpu.memory_space<smem>>
    %c2 = arith.constant 2 : index
    %8 = memref.load %arg1[%c2] : memref<10xf32, #tpu.memory_space<smem>>
    %c3 = arith.constant 3 : index
    %9 = memref.load %arg1[%c3] : memref<10xf32, #tpu.memory_space<smem>>
    %c4 = arith.constant 4 : index
    %10 = memref.load %arg1[%c4] : memref<10xf32, #tpu.memory_space<smem>>
    %c5 = arith.constant 5 : index
    %11 = memref.load %arg1[%c5] : memref<10xf32, #tpu.memory_space<smem>>
    %c6 = arith.constant 6 : index
    %12 = memref.load %arg1[%c6] : memref<10xf32, #tpu.memory_space<smem>>
    %c7 = arith.constant 7 : index
    %13 = memref.load %arg1[%c7] : memref<10xf32, #tpu.memory_space<smem>>
    %c8 = arith.constant 8 : index
    %14 = memref.load %arg1[%c8] : memref<10xf32, #tpu.memory_space<smem>>
    %c9 = arith.constant 9 : index
    %15 = memref.load %arg1[%c9] : memref<10xf32, #tpu.memory_space<smem>>
    %c127_i32 = arith.constant 127 : i32
    %16 = tpu.dynamic_rotate %0 by %c127_i32 dim 1 : vector<8x128xf32>, i32 -> vector<8x128xf32>
    %c1_i32_2 = arith.constant 1 : i32
    %17 = tpu.dynamic_rotate %0 by %c1_i32_2 dim 1 : vector<8x128xf32>, i32 -> vector<8x128xf32>
    %18 = vector.shape_cast %5 : vector<1x128xi1> to vector<1x128xi1>
    %19 = vector.broadcast %18 : vector<1x128xi1> to vector<8x128xi1>
    %20 = arith.select %19, %16, %17 : vector<8x128xi1>, vector<8x128xf32>
    %21 = vector.broadcast %6 : f32 to vector<1x128xf32>
    %22 = vector.broadcast %7 : f32 to vector<1x128xf32>
    %23 = arith.select %5, %21, %22 : vector<1x128xi1>, vector<1x128xf32>
    %24 = vector.broadcast %7 : f32 to vector<1x128xf32>
    %25 = vector.broadcast %6 : f32 to vector<1x128xf32>
    %26 = arith.select %5, %24, %25 : vector<1x128xi1>, vector<1x128xf32>
    %27 = vector.broadcast %23 : vector<1x128xf32> to vector<8x128xf32>
    %28 = arith.mulf %0, %27 : vector<8x128xf32>
    %29 = vector.broadcast %26 : vector<1x128xf32> to vector<8x128xf32>
    %30 = arith.mulf %20, %29 : vector<8x128xf32>
    %31 = arith.addf %28, %30 : vector<8x128xf32>
    %32 = arith.negf %31 : vector<8x128xf32>
    %33 = math.exp %32 : vector<8x128xf32>
    %cst = arith.constant 1.000000e+00 : f32
    %34 = vector.broadcast %cst : f32 to vector<8x128xf32>
    %35 = arith.addf %34, %33 : vector<8x128xf32>
    %36 = arith.divf %34, %35 : vector<8x128xf32>
    %cst_3 = arith.constant 1.000000e+00 : f32
    %37 = vector.broadcast %cst_3 : f32 to vector<8x128xf32>
    %38 = arith.subf %37, %36 : vector<8x128xf32>
    %39 = vector.broadcast %23 : vector<1x128xf32> to vector<8x128xf32>
    %40 = arith.subf %0, %39 : vector<8x128xf32>
    %41 = vector.broadcast %26 : vector<1x128xf32> to vector<8x128xf32>
    %42 = arith.subf %20, %41 : vector<8x128xf32>
    %43 = vector.broadcast %23 : vector<1x128xf32> to vector<8x128xf32>
    %44 = arith.addf %0, %43 : vector<8x128xf32>
    %45 = vector.broadcast %26 : vector<1x128xf32> to vector<8x128xf32>
    %46 = arith.addf %20, %45 : vector<8x128xf32>
    %47 = vector.broadcast %8 : f32 to vector<1x128xf32>
    %48 = vector.broadcast %11 : f32 to vector<1x128xf32>
    %49 = arith.select %5, %47, %48 : vector<1x128xi1>, vector<1x128xf32>
    %50 = vector.broadcast %9 : f32 to vector<1x128xf32>
    %51 = vector.broadcast %10 : f32 to vector<1x128xf32>
    %52 = arith.select %5, %50, %51 : vector<1x128xi1>, vector<1x128xf32>
    %53 = vector.broadcast %12 : f32 to vector<1x128xf32>
    %54 = vector.broadcast %15 : f32 to vector<1x128xf32>
    %55 = arith.select %5, %53, %54 : vector<1x128xi1>, vector<1x128xf32>
    %56 = vector.broadcast %13 : f32 to vector<1x128xf32>
    %57 = vector.broadcast %14 : f32 to vector<1x128xf32>
    %58 = arith.select %5, %56, %57 : vector<1x128xi1>, vector<1x128xf32>
    %59 = vector.broadcast %49 : vector<1x128xf32> to vector<8x128xf32>
    %60 = arith.mulf %59, %40 : vector<8x128xf32>
    %61 = vector.broadcast %52 : vector<1x128xf32> to vector<8x128xf32>
    %62 = arith.mulf %61, %42 : vector<8x128xf32>
    %63 = arith.addf %60, %62 : vector<8x128xf32>
    %64 = vector.broadcast %55 : vector<1x128xf32> to vector<8x128xf32>
    %65 = arith.mulf %64, %44 : vector<8x128xf32>
    %66 = vector.broadcast %58 : vector<1x128xf32> to vector<8x128xf32>
    %67 = arith.mulf %66, %46 : vector<8x128xf32>
    %68 = arith.addf %65, %67 : vector<8x128xf32>
    %69 = arith.mulf %36, %63 : vector<8x128xf32>
    %70 = arith.mulf %38, %68 : vector<8x128xf32>
    %71 = arith.addf %69, %70 : vector<8x128xf32>
    %c0_4 = arith.constant 0 : index
    %c0_5 = arith.constant 0 : index
    %72 = vector.load %arg3[%c0_4, %c0_5] : memref<8x128xf32, #tpu.memory_space<vmem>>, vector<8x128xf32>
    tpu.vector_store %arg3[%c0_4, %c0_5], %71 {strides = array<i32>} : memref<8x128xf32, #tpu.memory_space<vmem>>, vector<8x128xf32>,
    return
  }
  func.func @transform_0(%arg0: i32) -> i32 {
    %c0_i32 = arith.constant 0 : i32
    %c0_i32_0 = arith.constant 0 : i32
    return %c0_i32 : i32
  }
  func.func @transform_1(%arg0: i32) -> (i32, i32) {
    %c0_i32 = arith.constant 0 : i32
    %c0_i32_0 = arith.constant 0 : i32
    return %arg0, %c0_i32 : i32, i32
  }
  func.func @transform_2(%arg0: i32) -> (i32, i32) {
    %c0_i32 = arith.constant 0 : i32
    %c0_i32_0 = arith.constant 0 : i32
    return %arg0, %c0_i32 : i32, i32
  }
}

</mosaic_0001>

<llo_original>
// kernel: lambda2_forward.1
$region0: #{lambda2_forward.1}
  #allocation0 [shape = 'u32[]', space=smem, size = 0x4, offset = 0x4, fixed_abs, tag = 'smem constant byte address 0x4 - core index']
  #allocation1 [shape = 'u32[72,128]{1,0:T(1,128)}', space=vmem, size = 0x9000, scoped, tag = 'internal scratch']
  %s0 = inlined_call_operand.vmem [shape: f32[10], index: 0, kind: input, shape index: {}]
  %s1 = inlined_call_operand.vmem [shape: f32[8,128], index: 1, kind: input, shape index: {}]
  %s2 = inlined_call_operand.vmem [shape: f32[8,128], index: 2, kind: output, shape index: {}]
  %s3 = sld [smem:[#allocation0]]
  $region22: #{lambda2_forward.1} parent=0
    _
  %s5 = ssub.s32 1, %s3
  %s6 = scalar_select 0, %s5, %s3
  $region1: #{lambda2_forward.1} parent=0
    #allocation2 [shape = 'u8[512]{0}', space=smem, size = 0x200, scoped, tag = 'input window, operand 0, single buffered']
    #allocation3 [shape = 's32[1]{0}', space=sflag, size = 0x4, scoped, tag = 'scoped memory for lambda2_forward.1']
    %7 = vsyncpa [#allocation3], 0
    // Predicated region
    $region2: #{lambda2_forward.1} parent=1 // pred_check
      _
    $region3: #{lambda2_forward.1} parent=1 // pred_check_branch
      %9 = sbr.rel (0) target = $region5
    $region4: #{lambda2_forward.1} parent=1 // pred_region
      %11 = vsyncadd [#allocation3], 0
      %s13 = sshll.u32 %s0, 4
      %s14 = int_to_ptr.vmem [resolvable:$true] %s13
      %16 = dma.vmem_to_smem %s14, 16, [#allocation2], [#allocation3]
    $region5: #{lambda2_forward.1} parent=1 // pred_fallthru
      _
    // Predicated region
    $region6: #{lambda2_forward.1} parent=1 // pred_check
      _
    $region7: #{lambda2_forward.1} parent=1 // pred_check_branch
      %18 = sbr.rel (0) target = $region9
    $region8: #{lambda2_forward.1} parent=1 // pred_region
      _
    $region9: #{lambda2_forward.1} parent=1 // pred_fallthru
      _
    // Predicated region
    $region10: #{lambda2_forward.1} parent=1 // pred_check
      _
    $region11: #{lambda2_forward.1} parent=1 // pred_check_branch
      %20 = sbr.rel (0) target = $region13
    $region12: #{lambda2_forward.1} parent=1 // pred_region
      %22 = dma.done [#allocation3], 16
    $region13: #{lambda2_forward.1} parent=1 // pred_fallthru
      _
    %23 = sfence
    %v24 = vld [vmem:[%s1] sm:$0xff]
    %v25 = vlaneseq
    %v26 = vand.u32 %v25, 127
    %v27 = vand.u32 %v26, 1
    %vm28 = vcmp.eq.s32.totalorder %v27, 0
    %s29 = sld [smem:[#allocation2]]
    %s30 = sld [smem:[#allocation2 + $0x1]]
    %s31 = sld [smem:[#allocation2 + $0x2]]
    %s32 = sld [smem:[#allocation2 + $0x3]]
    %s33 = sld [smem:[#allocation2 + $0x4]]
    %s34 = sld [smem:[#allocation2 + $0x5]]
    %s35 = sld [smem:[#allocation2 + $0x6]]
    %s36 = sld [smem:[#allocation2 + $0x7]]
    %s37 = sld [smem:[#allocation2 + $0x8]]
    %s38 = sld [smem:[#allocation2 + $0x9]]
    %39 = vrot.lane.b32.xlu0 %v24, 127
    %v40 = vpop.permute.xlu0 %39
    %41 = vrot.lane.b32.xlu0 %v24, 1
    %v42 = vpop.permute.xlu0 %41
    %v43 = vsel %vm28, 1, 0
    %vm44 = vcmp.eq.s32.totalorder %v43, 1
    %v45 = vsel %vm44, %v40, %v42
    %v46 = vstv %s29
    %v47 = vstv %s30
    %v48 = vsel %vm28, %v46, %v47
    %v49 = vsel %vm28, %v47, %v46
    %v50 = vmul.f32 %v24, %v48
    %v51 = vmul.f32 %v45, %v49
    %v52 = vadd.f32 %v50, %v51
    %v53 = vxor.u32 %v52, 2147483648
    %v54 = vmul.f32 %v53, 1.442695
    %v55 = vpow.pop %v54
    %v56 = vadd.f32 %v55, 1.0
    %v57 = vrcp.pop %v56
    %v58 = vmul.f32 %v56, %v57
    %v59 = vsub.f32 1.0, %v58
    %v60 = vmul.f32 %v57, %v59
    %v61 = vadd.f32 %v57, %v60
    %vm62 = vweird.f32 %v56
    %vm63 = vweird.f32 %v57
    %vm64 = vmor %vm62, %vm63
    %v65 = vsel %vm64, %v57, %v61
    %v66 = vand.u32 2147483647, %v56
    %vm67 = vcmp.eq.f32.partialorder %v66, 8.507059e+37
    %v68 = vand.u32 %v56, 2147483648
    %v69 = vor.u32 1.1754944e-38, %v68
    %v70 = vsel %vm67, %v69, %v65
    %v71 = vmul.f32 1.0, %v70
    %v72 = vsub.f32 1.0, %v71
    %v73 = vsub.f32 %v24, %v48
    %v74 = vsub.f32 %v45, %v49
    %v75 = vadd.f32 %v24, %v48
    %v76 = vadd.f32 %v45, %v49
    %v77 = vstv %s31
    %v78 = vstv %s34
    %v79 = vsel %vm28, %v77, %v78
    %v80 = vstv %s32
    %v81 = vstv %s33
    %v82 = vsel %vm28, %v80, %v81
    %v83 = vstv %s35
    %v84 = vstv %s38
    %v85 = vsel %vm28, %v83, %v84
    %v86 = vstv %s36
    %v87 = vstv %s37
    %v88 = vsel %vm28, %v86, %v87
    %v89 = vmul.f32 %v79, %v73
    %v90 = vmul.f32 %v82, %v74
    %v91 = vadd.f32 %v89, %v90
    %v92 = vmul.f32 %v85, %v75
    %v93 = vmul.f32 %v88, %v76
    %v94 = vadd.f32 %v92, %v93
    %v95 = vmul.f32 %v71, %v91
    %v96 = vmul.f32 %v72, %v94
    %v97 = vadd.f32 %v95, %v96
    %98 = vst [vmem:[%s2] sm:$0xff] %v97
    // Predicated region
    $region14: #{lambda2_forward.1} parent=1 // pred_check
      _
    $region15: #{lambda2_forward.1} parent=1 // pred_check_branch
      %100 = sbr.rel (0) target = $region17
    $region16: #{lambda2_forward.1} parent=1 // pred_region
      _
    $region17: #{lambda2_forward.1} parent=1 // pred_fallthru
      _
    // Predicated region
    $region18: #{lambda2_forward.1} parent=1 // pred_check
      _
    $region19: #{lambda2_forward.1} parent=1 // pred_check_branch
      %102 = sbr.rel (0) target = $region21
    $region20: #{lambda2_forward.1} parent=1 // pred_region
      _
    $region21: #{lambda2_forward.1} parent=1 // pred_fallthru
      _
    %103 = vsyncpa [#allocation3], 1

</llo_original>
